<compile_context>
chip_gen: v7x
topology: tpu7x:2x2x1
jax: 0.10.0
libtpu: 0.0.40
codegen_flags: <defaults>
</compile_context>

<pallas_src>
import functools

import numpy as np
import jax
import jax.numpy as jnp
from jax.experimental import pallas as pl
from jax.experimental.pallas import tpu as pltpu

LANE = 128


def _round_up(x, m):
    return (x + m - 1) // m * m


@functools.lru_cache(maxsize=None)
def _fused_dft_matrix(L, F_pad, dtype_name):
    """[cos | -sin] real-DFT matrix, shape (L, 2*F_pad).

    Columns [0, F) hold cos, columns [F_pad, F_pad+F) hold -sin; everything
    else is zero, so the re/im split in the kernel is a free 128-lane-aligned
    slice and the padded frequency lanes come out exactly 0.
    """
    F = L // 2 + 1
    n = np.arange(L, dtype=np.float64)[:, None]
    k = np.arange(F, dtype=np.float64)[None, :]
    ang = 2.0 * np.pi * n * k / L
    m = np.zeros((L, 2 * F_pad), dtype=np.float32)
    m[:, :F] = np.cos(ang)
    m[:, F_pad:F_pad + F] = -np.sin(ang)
    return jnp.asarray(m, dtype=dtype_name)


def fft_filter_kernel(x_ref, dft_ref, w1_ref, b1_ref, w2_ref, b2_ref, o_ref):
    # In-kernel low-precision cast: hides under the MXU, avoids a wrapper-side
    # pad/convert pass over the whole batch in HBM.
    x = x_ref[...].astype(dft_ref.dtype)                      # (tm, L)
    # Fused real DFT: one MXU pass yields [re | im], split on a 128-lane boundary.
    ri = jnp.dot(x, dft_ref[...], preferred_element_type=jnp.float32)
    fp = dft_ref.shape[1] // 2
    re = ri[:, :fp]
    im = ri[:, fp:]
    freq = jnp.sqrt(re * re + im * im)                        # |rfft(x)|, f32

    h = jnp.dot(freq.astype(w1_ref.dtype), w1_ref[...],
                preferred_element_type=jnp.float32) + b1_ref[...]
    h = jax.nn.sigmoid(h)                                     # (tm, H_pad) f32

    out = jnp.dot(h.astype(w2_ref.dtype), w2_ref[...],
                  preferred_element_type=jnp.float32) + b2_ref[...]
    o_ref[...] = jax.nn.sigmoid(out)                          # (tm, O) f32, narrow writeback


def learning_fft_filter(sample, w1, b1, w2, b2, *, block_rows=1024):
    """sample: (B, L) f32. w1: (F, 16), b1: (16,)/(1,16), w2: (16, O), b2: (O,)/(1,O)."""
    B, L = sample.shape
    F = L // 2 + 1
    H = w1.shape[1]
    O = w2.shape[1]
    assert w1.shape == (F, H) and w2.shape == (H, O)
    b1 = jnp.asarray(b1).reshape(1, H)    # normalize bias shape (PyTorch Linear semantics)
    b2 = jnp.asarray(b2).reshape(1, O)

    F_pad = _round_up(F, LANE)
    H_pad = _round_up(H, LANE)

    # Batch tiling: >=2 grid steps when possible (v7x megacore sharding + DMA
    # prefetch overlap), and keep the row pad strictly below one tile.
    n_tiles = max(pl.cdiv(B, block_rows), 2 if B >= 16 else 1)
    tm = _round_up(pl.cdiv(B, n_tiles), 8)
    B_pad = _round_up(B, tm)

    # bf16 twiddles are accurate enough at small/medium L (|rfft| error ~ sqrt(L)*2^-8);
    # switch to f32 twiddles (and an f32 first matmul) for large L.
    dft_dtype = "bfloat16" if L <= 512 else "float32"
    dft = _fused_dft_matrix(L, F_pad, dft_dtype)               # (L, 2*F_pad), cached

    # Only a small row pad on x; keep f32 and the native L lane dim (full-dim
    # block), so there is no extra HBM pad/convert pass over the batch.
    x_p = sample if B_pad == B else jnp.pad(sample, ((0, B_pad - B), (0, 0)))

    w1_p = jnp.pad(w1, ((0, F_pad - F), (0, H_pad - H))).astype(jnp.bfloat16)
    b1_p = jnp.pad(b1, ((0, 0), (0, H_pad - H))).astype(jnp.float32)
    w2_p = jnp.pad(w2, ((0, H_pad - H), (0, 0))).astype(jnp.bfloat16)   # (H_pad, O): no O pad
    b2_p = b2.astype(jnp.float32)

    # Scoped-VMEM budget from the working set: single-buffered constants,
    # double-buffered x/out tiles, f32 ri/freq/h temporaries (+ headroom).
    const_bytes = (dft.size * dft.dtype.itemsize + w1_p.size * 2 + b1_p.size * 4
                   + w2_p.size * 2 + b2_p.size * 4)
    tile_bytes = 2 * tm * L * 4 + 2 * tm * O * 4
    tmp_bytes = tm * (2 * F_pad + F_pad + H_pad) * 4 + tm * (L + F_pad + H_pad) * 2
    vmem_limit = int(min(max(2 * (const_bytes + tile_bytes + tmp_bytes) + (2 << 20),
                             16 << 20), 64 << 20))

    const = lambda i: (0, 0)

    def build_in_specs(**const_kw):
        return [
            pl.BlockSpec((tm, L), lambda i: (i, 0)),             # x tile, pipelined
            pl.BlockSpec((L, 2 * F_pad), const, **const_kw),     # fused [cos | -sin]
            pl.BlockSpec((F_pad, H_pad), const, **const_kw),     # w1
            pl.BlockSpec((1, H_pad), const, **const_kw),         # b1
            pl.BlockSpec((H_pad, O), const, **const_kw),         # w2
            pl.BlockSpec((1, O), const, **const_kw),             # b2
        ]

    def run(in_specs):
        return pl.pallas_call(
            fft_filter_kernel,
            out_shape=jax.ShapeDtypeStruct((B_pad, O), jnp.float32),  # narrow-O writeback
            grid=(B_pad // tm,),
            in_specs=in_specs,
            out_specs=pl.BlockSpec((tm, O), lambda i: (i, 0)),
            compiler_params=pltpu.CompilerParams(
                dimension_semantics=("parallel",),   # shard batch across v7x's 2 TCs
                vmem_limit_bytes=vmem_limit,
            ),
        )(x_p, dft, w1_p, b1_p, w2_p, b2_p)

    try:
        # Grid-invariant operands: constant index_map + single buffer (a second
        # pipeline buffer for a never-changing block is pure VMEM waste).
        out_p = run(build_in_specs(pipeline_mode=pl.Buffered(1)))
    except Exception:
        # Fallback for toolchains without per-BlockSpec buffer-count control.
        out_p = run(build_in_specs())

    # TODO(synk): for very large L (>~2k) tile the DFT over the frequency axis
    # with an "arbitrary" reduction grid dim accumulating the w1 matmul into an
    # f32 scratch (pl.when init/finalize), and/or factorize the DFT
    # (Cooley-Tukey, L = L1*L2) once the kernel flips MXU-bound; unnecessary here.
    return out_p[:B, :]


def reference(sample, w1, b1, w2, b2):
    freq = jnp.abs(jnp.fft.rfft(sample, axis=-1))
    x = jax.nn.sigmoid(freq @ w1 + b1)
    return jax.nn.sigmoid(x @ w2 + b2)


if __name__ == "__main__":
    # Small shapes: seq length 30 -> rfft size 16 == input_size of layer_1; output_size 4.
    B, L = 8, 30
    F = L // 2 + 1          # 16 == input_size of layer_1
    H = 16                  # hidden (fixed by the module)
    O = 4                   # output_size

    key = jax.random.PRNGKey(0)
    k_x, k_w1, k_b1, k_w2, k_b2 = jax.random.split(key, 5)

    sample = jax.random.normal(k_x, (B, L), dtype=jnp.float32)

    # Deterministic parameter init (PyTorch-Linear-style uniform bounds).
    bound1 = 1.0 / np.sqrt(F)
    bound2 = 1.0 / np.sqrt(H)
    w1 = jax.random.uniform(k_w1, (F, H), jnp.float32, -bound1, bound1)
    b1 = jax.random.uniform(k_b1, (1, H), jnp.float32, -bound1, bound1)
    w2 = jax.random.uniform(k_w2, (H, O), jnp.float32, -bound2, bound2)
    b2 = jax.random.uniform(k_b2, (1, O), jnp.float32, -bound2, bound2)

    out = jax.block_until_ready(learning_fft_filter(sample, w1, b1, w2, b2))
    ref = jax.block_until_ready(reference(sample, w1, b1, w2, b2))

    # bf16 MXU operands (f32 accumulation) -> slightly relaxed tolerance.
    np.testing.assert_allclose(np.asarray(out), np.asarray(ref), rtol=1e-2, atol=1e-2)

    print("KERNEL_OK")
</pallas_src>

<mosaic_0001>
module attributes {stable_mosaic.version = 11 : i64} {
  func.func @fft_filter_kernel(%arg0: i32, %arg1: memref<8x30xf32, #tpu.memory_space<vmem>>, %arg2: memref<30x256xbf16, #tpu.memory_space<vmem>>, %arg3: memref<128x128xbf16, #tpu.memory_space<vmem>>, %arg4: memref<1x128xf32, #tpu.memory_space<vmem>>, %arg5: memref<128x4xbf16, #tpu.memory_space<vmem>>, %arg6: memref<1x4xf32, #tpu.memory_space<vmem>>, %arg7: memref<8x4xf32, #tpu.memory_space<vmem>>) attributes {dimension_semantics = [#tpu.dimension_semantics<parallel>], iteration_bounds = array<i64: 1>, scalar_prefetch = 0 : i64, scratch_operands = 0 : i64, tpu.core_type = #tpu.core_type<tc>, window_params = [{transform_indices = @transform_0, window_bounds = array<i64: 8, 30>}, {pipeline_mode = #tpu.pipeline_mode<synchronous>, transform_indices = @transform_1, window_bounds = array<i64: 30, 256>}, {pipeline_mode = #tpu.pipeline_mode<synchronous>, transform_indices = @transform_2, window_bounds = array<i64: 128, 128>}, {pipeline_mode = #tpu.pipeline_mode<synchronous>, transform_indices = @transform_3, window_bounds = array<i64: 1, 128>}, {pipeline_mode = #tpu.pipeline_mode<synchronous>, transform_indices = @transform_4, window_bounds = array<i64: 128, 4>}, {pipeline_mode = #tpu.pipeline_mode<synchronous>, transform_indices = @transform_5, window_bounds = array<i64: 1, 4>}, {transform_indices = @transform_6, window_bounds = array<i64: 8, 4>}]} {
    %c0 = arith.constant 0 : index
    %c0_0 = arith.constant 0 : index
    %0 = vector.load %arg1[%c0, %c0_0] : memref<8x30xf32, #tpu.memory_space<vmem>>, vector<8x30xf32>
    %1 = arith.truncf %0 : vector<8x30xf32> to vector<8x30xbf16>
    %c0_1 = arith.constant 0 : index
    %c0_2 = arith.constant 0 : index
    %2 = vector.load %arg2[%c0_1, %c0_2] : memref<30x256xbf16, #tpu.memory_space<vmem>>, vector<30x256xbf16>
    %cst = arith.constant dense<0.000000e+00> : vector<8x256xf32>
    %3 = tpu.matmul %1, %2, %cst {dimension_numbers = #tpu.dot_dimension_numbers<[1], [0], [0], [1], [0, 0, 1, 1], [], []>} : vector<8x30xbf16>, vector<30x256xbf16>, vector<8x256xf32> -> vector<8x256xf32>
    %4 = vector.extract_strided_slice %3 {offsets = [0, 0], sizes = [8, 128], strides = [1, 1]} : vector<8x256xf32> to vector<8x128xf32>
    %5 = vector.extract_strided_slice %3 {offsets = [0, 128], sizes = [8, 128], strides = [1, 1]} : vector<8x256xf32> to vector<8x128xf32>
    %6 = arith.mulf %4, %4 : vector<8x128xf32>
    %7 = arith.mulf %5, %5 : vector<8x128xf32>
    %8 = arith.addf %6, %7 : vector<8x128xf32>
    %9 = math.sqrt %8 : vector<8x128xf32>
    %10 = arith.truncf %9 : vector<8x128xf32> to vector<8x128xbf16>
    %c0_3 = arith.constant 0 : index
    %c0_4 = arith.constant 0 : index
    %11 = vector.load %arg3[%c0_3, %c0_4] : memref<128x128xbf16, #tpu.memory_space<vmem>>, vector<128x128xbf16>
    %cst_5 = arith.constant dense<0.000000e+00> : vector<8x128xf32>
    %12 = tpu.matmul %10, %11, %cst_5 {dimension_numbers = #tpu.dot_dimension_numbers<[1], [0], [0], [1], [0, 0, 1, 1], [], []>} : vector<8x128xbf16>, vector<128x128xbf16>, vector<8x128xf32> -> vector<8x128xf32>
    %c0_6 = arith.constant 0 : index
    %c0_7 = arith.constant 0 : index
    %13 = vector.load %arg4[%c0_6, %c0_7] : memref<1x128xf32, #tpu.memory_space<vmem>>, vector<1x128xf32>
    %14 = vector.broadcast %13 : vector<1x128xf32> to vector<8x128xf32>
    %15 = arith.addf %12, %14 : vector<8x128xf32>
    %16 = arith.negf %15 : vector<8x128xf32>
    %17 = math.exp %16 : vector<8x128xf32>
    %cst_8 = arith.constant 1.000000e+00 : f32
    %18 = vector.broadcast %cst_8 : f32 to vector<8x128xf32>
    %19 = arith.addf %18, %17 : vector<8x128xf32>
    %20 = arith.divf %18, %19 : vector<8x128xf32>
    %21 = arith.truncf %20 : vector<8x128xf32> to vector<8x128xbf16>
    %c0_9 = arith.constant 0 : index
    %c0_10 = arith.constant 0 : index
    %22 = vector.load %arg5[%c0_9, %c0_10] : memref<128x4xbf16, #tpu.memory_space<vmem>>, vector<128x4xbf16>
    %cst_11 = arith.constant dense<0.000000e+00> : vector<8x4xf32>
    %23 = tpu.matmul %21, %22, %cst_11 {dimension_numbers = #tpu.dot_dimension_numbers<[1], [0], [0], [1], [0, 0, 1, 1], [], []>} : vector<8x128xbf16>, vector<128x4xbf16>, vector<8x4xf32> -> vector<8x4xf32>
    %c0_12 = arith.constant 0 : index
    %c0_13 = arith.constant 0 : index
    %24 = vector.load %arg6[%c0_12, %c0_13] : memref<1x4xf32, #tpu.memory_space<vmem>>, vector<1x4xf32>
    %25 = vector.broadcast %24 : vector<1x4xf32> to vector<8x4xf32>
    %26 = arith.addf %23, %25 : vector<8x4xf32>
    %27 = arith.negf %26 : vector<8x4xf32>
    %28 = math.exp %27 : vector<8x4xf32>
    %cst_14 = arith.constant 1.000000e+00 : f32
    %29 = vector.broadcast %cst_14 : f32 to vector<8x4xf32>
    %30 = arith.addf %29, %28 : vector<8x4xf32>
    %31 = arith.divf %29, %30 : vector<8x4xf32>
    %c0_15 = arith.constant 0 : index
    %c0_16 = arith.constant 0 : index
    %32 = vector.load %arg7[%c0_15, %c0_16] : memref<8x4xf32, #tpu.memory_space<vmem>>, vector<8x4xf32>
    tpu.vector_store %arg7[%c0_15, %c0_16], %31 {strides = array<i32>} : memref<8x4xf32, #tpu.memory_space<vmem>>, vector<8x4xf32>,
    return
  }
  func.func @transform_0(%arg0: i32) -> (i32, i32) {
    %c0_i32 = arith.constant 0 : i32
    %c0_i32_0 = arith.constant 0 : i32
    return %arg0, %c0_i32 : i32, i32
  }
  func.func @transform_1(%arg0: i32) -> (i32, i32) {
    %c0_i32 = arith.constant 0 : i32
    %c0_i32_0 = arith.constant 0 : i32
    %c0_i32_1 = arith.constant 0 : i32
    return %c0_i32, %c0_i32_0 : i32, i32
  }
  func.func @transform_2(%arg0: i32) -> (i32, i32) {
    %c0_i32 = arith.constant 0 : i32
    %c0_i32_0 = arith.constant 0 : i32
    %c0_i32_1 = arith.constant 0 : i32
    return %c0_i32, %c0_i32_0 : i32, i32
  }
  func.func @transform_3(%arg0: i32) -> (i32, i32) {
    %c0_i32 = arith.constant 0 : i32
    %c0_i32_0 = arith.constant 0 : i32
    %c0_i32_1 = arith.constant 0 : i32
    return %c0_i32, %c0_i32_0 : i32, i32
  }
  func.func @transform_4(%arg0: i32) -> (i32, i32) {
    %c0_i32 = arith.constant 0 : i32
    %c0_i32_0 = arith.constant 0 : i32
    %c0_i32_1 = arith.constant 0 : i32
    return %c0_i32, %c0_i32_0 : i32, i32
  }
  func.func @transform_5(%arg0: i32) -> (i32, i32) {
    %c0_i32 = arith.constant 0 : i32
    %c0_i32_0 = arith.constant 0 : i32
    %c0_i32_1 = arith.constant 0 : i32
    return %c0_i32, %c0_i32_0 : i32, i32
  }
  func.func @transform_6(%arg0: i32) -> (i32, i32) {
    %c0_i32 = arith.constant 0 : i32
    %c0_i32_0 = arith.constant 0 : i32
    return %arg0, %c0_i32 : i32, i32
  }
}

module attributes {stable_mosaic.version = 11 : i64} {
  func.func @fft_filter_kernel(%arg0: i32, %arg1: memref<8x30xf32, #tpu.memory_space<vmem>>, %arg2: memref<30x256xbf16, #tpu.memory_space<vmem>>, %arg3: memref<128x128xbf16, #tpu.memory_space<vmem>>, %arg4: memref<1x128xf32, #tpu.memory_space<vmem>>, %arg5: memref<128x4xbf16, #tpu.memory_space<vmem>>, %arg6: memref<1x4xf32, #tpu.memory_space<vmem>>, %arg7: memref<8x4xf32, #tpu.memory_space<vmem>>) attributes {dimension_semantics = [#tpu.dimension_semantics<parallel>], iteration_bounds = array<i64: 1>, scalar_prefetch = 0 : i64, scratch_operands = 0 : i64, tpu.core_type = #tpu.core_type<tc>, window_params = [{transform_indices = @transform_0, window_bounds = array<i64: 8, 30>}, {pipeline_mode = #tpu.pipeline_mode<synchronous>, transform_indices = @transform_1, window_bounds = array<i64: 30, 256>}, {pipeline_mode = #tpu.pipeline_mode<synchronous>, transform_indices = @transform_2, window_bounds = array<i64: 128, 128>}, {pipeline_mode = #tpu.pipeline_mode<synchronous>, transform_indices = @transform_3, window_bounds = array<i64: 1, 128>}, {pipeline_mode = #tpu.pipeline_mode<synchronous>, transform_indices = @transform_4, window_bounds = array<i64: 128, 4>}, {pipeline_mode = #tpu.pipeline_mode<synchronous>, transform_indices = @transform_5, window_bounds = array<i64: 1, 4>}, {transform_indices = @transform_6, window_bounds = array<i64: 8, 4>}]} {
    %c0 = arith.constant 0 : index
    %c0_0 = arith.constant 0 : index
    %0 = vector.load %arg1[%c0, %c0_0] : memref<8x30xf32, #tpu.memory_space<vmem>>, vector<8x30xf32>
    %1 = arith.truncf %0 : vector<8x30xf32> to vector<8x30xbf16>
    %c0_1 = arith.constant 0 : index
    %c0_2 = arith.constant 0 : index
    %2 = vector.load %arg2[%c0_1, %c0_2] : memref<30x256xbf16, #tpu.memory_space<vmem>>, vector<30x256xbf16>
    %cst = arith.constant dense<0.000000e+00> : vector<8x256xf32>
    %3 = tpu.matmul %1, %2, %cst {dimension_numbers = #tpu.dot_dimension_numbers<[1], [0], [0], [1], [0, 0, 1, 1], [], []>} : vector<8x30xbf16>, vector<30x256xbf16>, vector<8x256xf32> -> vector<8x256xf32>
    %4 = vector.extract_strided_slice %3 {offsets = [0, 0], sizes = [8, 128], strides = [1, 1]} : vector<8x256xf32> to vector<8x128xf32>
    %5 = vector.extract_strided_slice %3 {offsets = [0, 128], sizes = [8, 128], strides = [1, 1]} : vector<8x256xf32> to vector<8x128xf32>
    %6 = arith.mulf %4, %4 : vector<8x128xf32>
    %7 = arith.mulf %5, %5 : vector<8x128xf32>
    %8 = arith.addf %6, %7 : vector<8x128xf32>
    %9 = math.sqrt %8 : vector<8x128xf32>
    %10 = arith.truncf %9 : vector<8x128xf32> to vector<8x128xbf16>
    %c0_3 = arith.constant 0 : index
    %c0_4 = arith.constant 0 : index
    %11 = vector.load %arg3[%c0_3, %c0_4] : memref<128x128xbf16, #tpu.memory_space<vmem>>, vector<128x128xbf16>
    %cst_5 = arith.constant dense<0.000000e+00> : vector<8x128xf32>
    %12 = tpu.matmul %10, %11, %cst_5 {dimension_numbers = #tpu.dot_dimension_numbers<[1], [0], [0], [1], [0, 0, 1, 1], [], []>} : vector<8x128xbf16>, vector<128x128xbf16>, vector<8x128xf32> -> vector<8x128xf32>
    %c0_6 = arith.constant 0 : index
    %c0_7 = arith.constant 0 : index
    %13 = vector.load %arg4[%c0_6, %c0_7] : memref<1x128xf32, #tpu.memory_space<vmem>>, vector<1x128xf32>
    %14 = vector.broadcast %13 : vector<1x128xf32> to vector<8x128xf32>
    %15 = arith.addf %12, %14 : vector<8x128xf32>
    %16 = arith.negf %15 : vector<8x128xf32>
    %17 = math.exp %16 : vector<8x128xf32>
    %cst_8 = arith.constant 1.000000e+00 : f32
    %18 = vector.broadcast %cst_8 : f32 to vector<8x128xf32>
    %19 = arith.addf %18, %17 : vector<8x128xf32>
    %20 = arith.divf %18, %19 : vector<8x128xf32>
    %21 = arith.truncf %20 : vector<8x128xf32> to vector<8x128xbf16>
    %c0_9 = arith.constant 0 : index
    %c0_10 = arith.constant 0 : index
    %22 = vector.load %arg5[%c0_9, %c0_10] : memref<128x4xbf16, #tpu.memory_space<vmem>>, vector<128x4xbf16>
    %cst_11 = arith.constant dense<0.000000e+00> : vector<8x4xf32>
    %23 = tpu.matmul %21, %22, %cst_11 {dimension_numbers = #tpu.dot_dimension_numbers<[1], [0], [0], [1], [0, 0, 1, 1], [], []>} : vector<8x128xbf16>, vector<128x4xbf16>, vector<8x4xf32> -> vector<8x4xf32>
    %c0_12 = arith.constant 0 : index
    %c0_13 = arith.constant 0 : index
    %24 = vector.load %arg6[%c0_12, %c0_13] : memref<1x4xf32, #tpu.memory_space<vmem>>, vector<1x4xf32>
    %25 = vector.broadcast %24 : vector<1x4xf32> to vector<8x4xf32>
    %26 = arith.addf %23, %25 : vector<8x4xf32>
    %27 = arith.negf %26 : vector<8x4xf32>
    %28 = math.exp %27 : vector<8x4xf32>
    %cst_14 = arith.constant 1.000000e+00 : f32
    %29 = vector.broadcast %cst_14 : f32 to vector<8x4xf32>
    %30 = arith.addf %29, %28 : vector<8x4xf32>
    %31 = arith.divf %29, %30 : vector<8x4xf32>
    %c0_15 = arith.constant 0 : index
    %c0_16 = arith.constant 0 : index
    %32 = vector.load %arg7[%c0_15, %c0_16] : memref<8x4xf32, #tpu.memory_space<vmem>>, vector<8x4xf32>
    tpu.vector_store %arg7[%c0_15, %c0_16], %31 {strides = array<i32>} : memref<8x4xf32, #tpu.memory_space<vmem>>, vector<8x4xf32>,
    return
  }
  func.func @transform_0(%arg0: i32) -> (i32, i32) {
    %c0_i32 = arith.constant 0 : i32
    %c0_i32_0 = arith.constant 0 : i32
    return %arg0, %c0_i32 : i32, i32
  }
  func.func @transform_1(%arg0: i32) -> (i32, i32) {
    %c0_i32 = arith.constant 0 : i32
    %c0_i32_0 = arith.constant 0 : i32
    %c0_i32_1 = arith.constant 0 : i32
    return %c0_i32, %c0_i32_0 : i32, i32
  }
  func.func @transform_2(%arg0: i32) -> (i32, i32) {
    %c0_i32 = arith.constant 0 : i32
    %c0_i32_0 = arith.constant 0 : i32
    %c0_i32_1 = arith.constant 0 : i32
    return %c0_i32, %c0_i32_0 : i32, i32
  }
  func.func @transform_3(%arg0: i32) -> (i32, i32) {
    %c0_i32 = arith.constant 0 : i32
    %c0_i32_0 = arith.constant 0 : i32
    %c0_i32_1 = arith.constant 0 : i32
    return %c0_i32, %c0_i32_0 : i32, i32
  }
  func.func @transform_4(%arg0: i32) -> (i32, i32) {
    %c0_i32 = arith.constant 0 : i32
    %c0_i32_0 = arith.constant 0 : i32
    %c0_i32_1 = arith.constant 0 : i32
    return %c0_i32, %c0_i32_0 : i32, i32
  }
  func.func @transform_5(%arg0: i32) -> (i32, i32) {
    %c0_i32 = arith.constant 0 : i32
    %c0_i32_0 = arith.constant 0 : i32
    %c0_i32_1 = arith.constant 0 : i32
    return %c0_i32, %c0_i32_0 : i32, i32
  }
  func.func @transform_6(%arg0: i32) -> (i32, i32) {
    %c0_i32 = arith.constant 0 : i32
    %c0_i32_0 = arith.constant 0 : i32
    return %arg0, %c0_i32 : i32, i32
  }
}

</mosaic_0001>

<llo_original>
// kernel: tpu_custom_call.1
$region0: #{tpu_custom_call.1}
  #allocation0 [shape = 'u32[]', space=smem, size = 0x4, offset = 0x4, fixed_abs, tag = 'smem constant byte address 0x4 - core index']
  #allocation1 [shape = 'u32[144,128]{1,0:T(1,128)}', space=vmem, size = 0x12000, scoped, tag = 'internal scratch']
  %s0 = inlined_call_operand.vmem [shape: f32[8,30], index: 0, kind: input, shape index: {}]
  %s1 = inlined_call_operand.hbm [shape: bf16[30,256], index: 1, kind: input, shape index: {}]
  %s2 = inlined_call_operand.vmem [shape: bf16[128,128], index: 2, kind: input, shape index: {}]
  %s3 = inlined_call_operand.vmem [shape: f32[1,128], index: 3, kind: input, shape index: {}]
  %s4 = inlined_call_operand.vmem [shape: bf16[128,4], index: 4, kind: input, shape index: {}]
  %s5 = inlined_call_operand.vmem [shape: f32[1,4], index: 5, kind: input, shape index: {}]
  %s6 = inlined_call_operand.vmem [shape: f32[8,4], index: 6, kind: output, shape index: {}]
  %s7 = sld [smem:[#allocation0]]
  $region38: #{tpu_custom_call.1} parent=0
    _
  %s9 = ssub.s32 1, %s7
  %s10 = scalar_select 0, %s9, %s7
  $region1: #{tpu_custom_call.1} parent=0
    #allocation2 [shape = 'u8[16384]{0}', space=vmem, size = 0x4000, scoped, tag = 'input window, operand 1, single buffered']
    #allocation3 [shape = 's32[1]{0}', space=sflag, size = 0x4, scoped, tag = 'scoped memory for tpu_custom_call.1']
    %11 = vsyncpa [#allocation3], 0
    // Predicated region
    $region2: #{tpu_custom_call.1} parent=1 // pred_check
      _
    $region3: #{tpu_custom_call.1} parent=1 // pred_check_branch
      %13 = sbr.rel (0) target = $region5
    $region4: #{tpu_custom_call.1} parent=1 // pred_region
      _
    $region5: #{tpu_custom_call.1} parent=1 // pred_fallthru
      _
    // Predicated region
    $region6: #{tpu_custom_call.1} parent=1 // pred_check
      _
    $region7: #{tpu_custom_call.1} parent=1 // pred_check_branch
      %15 = sbr.rel (0) target = $region9
    $region8: #{tpu_custom_call.1} parent=1 // pred_region
      %s17 = ssub.s32 512, 512
      %18 = vsyncadd [#allocation3], %s17
      %s19 = sshll.u32 [#allocation2], 4
      %s20 = int_to_ptr.vmem [resolvable:$true] %s19
      %25 = dma.hbm_to_vmem [thread:$0]  %s1, 512, %s20, [#allocation3], 128, 128, 8
    $region9: #{tpu_custom_call.1} parent=1 // pred_fallthru
      _
    // Predicated region
    $region10: #{tpu_custom_call.1} parent=1 // pred_check
      _
    $region11: #{tpu_custom_call.1} parent=1 // pred_check_branch
      %27 = sbr.rel (0) target = $region13
    $region12: #{tpu_custom_call.1} parent=1 // pred_region
      _
    $region13: #{tpu_custom_call.1} parent=1 // pred_fallthru
      _
    // Predicated region
    $region14: #{tpu_custom_call.1} parent=1 // pred_check
      _
    $region15: #{tpu_custom_call.1} parent=1 // pred_check_branch
      %29 = sbr.rel (0) target = $region17
    $region16: #{tpu_custom_call.1} parent=1 // pred_region
      _
    $region17: #{tpu_custom_call.1} parent=1 // pred_fallthru
      _
    // Predicated region
    $region18: #{tpu_custom_call.1} parent=1 // pred_check
      _
    $region19: #{tpu_custom_call.1} parent=1 // pred_check_branch
      %31 = sbr.rel (0) target = $region21
    $region20: #{tpu_custom_call.1} parent=1 // pred_region
      _
    $region21: #{tpu_custom_call.1} parent=1 // pred_fallthru
      _
    // Predicated region
    $region22: #{tpu_custom_call.1} parent=1 // pred_check
      _
    $region23: #{tpu_custom_call.1} parent=1 // pred_check_branch
      %33 = sbr.rel (0) target = $region25
    $region24: #{tpu_custom_call.1} parent=1 // pred_region
      _
    $region25: #{tpu_custom_call.1} parent=1 // pred_fallthru
      _
    // Predicated region
    $region26: #{tpu_custom_call.1} parent=1 // pred_check
      _
    $region27: #{tpu_custom_call.1} parent=1 // pred_check_branch
      %35 = sbr.rel (0) target = $region29
    $region28: #{tpu_custom_call.1} parent=1 // pred_region
      %36 = dma.done [#allocation3], 512
    $region29: #{tpu_custom_call.1} parent=1 // pred_fallthru
      _
    %v38 = vld [vmem:[%s0] sm:$0xff]
    %v39 = vpack.c.bf16 %v38, %v38
    %v40 = vld [vmem:[#allocation2] sm:$0xff]
    %v41 = vld [vmem:[#allocation2 + $0x8] sm:$0xff]
    %v42 = vld [vmem:[#allocation2 + $0x10] sm:$0xff]
    %v43 = vld [vmem:[#allocation2 + $0x18] sm:$0x77]
    %v48 = vunpack.c.l.b16 %v40
    %v49 = vunpack.c.h.b16 %v40
    %v50 = vunpack.c.l.b16 %v41
    %v51 = vunpack.c.h.b16 %v41
    %v52 = vunpack.c.l.b16 %v42
    %v53 = vunpack.c.h.b16 %v42
    %v54 = vunpack.c.l.b16 %v43
    %v55 = vunpack.c.h.b16 %v43
    %v56 = vpack.c.b16 %v50, %v48
    %v57 = vpack.c.b16 %v51, %v49
    %v58 = vpack.c.b16 %v54, %v52
    %v59 = vpack.c.b16 %v55, %v53
    %vm62 = vcmask 244736
    %v64 = vsel %vm62, %v39, 0
    %vm66 = vcmask 1046528
    %v68 = vsel %vm66, %v58, 0
    %v71 = vsel %vm66, %v59, 0
    %73 = vmatprep.subr.bf16.mxu0 %v57
    %74 = vmatpush1.bf16.msra.mxu0 %v56
    %75 = vmatprep.subr.bf16.mxu0 %v71
    %76 = vmatpush1.bf16.msra.mxu0 %v68
    %77 = vmatprep.subr.bf16.mxu0 0
    %78 = vmatpush1.bf16.msra.mxu0 0
    %79 = vmatprep.subr.bf16.mxu0 0
    %80 = vmatpush1.bf16.msra.mxu0 0
    %81 = vmatprep.subr.bf16.mxu0 0
    %82 = vmatpush1.bf16.msra.mxu0 0
    %83 = vmatprep.subr.bf16.mxu0 0
    %84 = vmatpush1.bf16.msra.mxu0 0
    %85 = vmatprep.subr.bf16.mxu0 0
    %86 = vmatpush1.bf16.msra.mxu0 0
    %87 = vmatprep.subr.bf16.mxu0 0
    %88 = vmatpush1.bf16.msra.mxu0 0
    %89 = vmatprep.subr.bf16.mxu0 0
    %90 = vmatpush1.bf16.msra.mxu0 0
    %91 = vmatprep.subr.bf16.mxu0 0
    %92 = vmatpush1.bf16.msra.mxu0 0
    %93 = vmatprep.subr.bf16.mxu0 0
    %94 = vmatpush1.bf16.msra.mxu0 0
    %95 = vmatprep.subr.bf16.mxu0 0
    %96 = vmatpush1.bf16.msra.mxu0 0
    %97 = vmatprep.subr.bf16.mxu0 0
    %98 = vmatpush1.bf16.msra.mxu0 0
    %99 = vmatprep.subr.bf16.mxu0 0
    %100 = vmatpush1.bf16.msra.mxu0 0
    %101 = vmatprep.subr.bf16.mxu0 0
    %102 = vmatpush1.bf16.msra.mxu0 0
    %103 = vmatprep.subr.bf16.mxu0 0
    %104 = vmatpush1.bf16.msra.mxu0 0
    %105 = vmatprep.mubr.bf16.mxu0 0
    %106 = vmatmul.mubr.bf16.gmra.mrb[0].mxu0 %v64
    %v107 = vpop.f32.mrb[0].mxu0
    %v108 = vadd.f32 0.0, %v107
    %v109 = vpop.f32.mrb[0].mxu0
    %v110 = vadd.f32 0.0, %v109
    %v111 = vpop.f32.mrb[0].mxu0
    %v112 = vpop.f32.mrb[0].mxu0
    %113 = vdwg.mxu0
    %v114 = vmul.f32 %v108, %v108
    %v115 = vmul.f32 %v110, %v110
    %v116 = vadd.f32 %v114, %v115
    %v117 = vrsqrt.pop %v116
    %v118 = vmul.f32 %v116, %v117
    %vm119 = vcmp.eq.f32.partialorder %v116, inf
    %v120 = vsel %vm119, %v116, %v118
    %vm121 = vcmp.eq.f32.partialorder %v116, 0.0
    %v122 = vand.u32 %v116, 2147483648
    %v123 = vsel %vm121, %v122, %v120
    %v124 = vpack.c.bf16 %v123, %v123
    %v125 = vld [vmem:[%s2] sm:$0xf]
    %v126 = vld [vmem:[%s2 + $0x4] sm:$0xf]
    %v127 = vld [vmem:[%s2 + $0x8] sm:$0xf]
    %v128 = vld [vmem:[%s2 + $0xc] sm:$0xf]
    %v129 = vld [vmem:[%s2 + $0x10] sm:$0xf]
    %v130 = vld [vmem:[%s2 + $0x14] sm:$0xf]
    %v131 = vld [vmem:[%s2 + $0x18] sm:$0xf]
    %v132 = vld [vmem:[%s2 + $0x1c] sm:$0xf]
    %v133 = vld [vmem:[%s2 + $0x20] sm:$0xf]
    %v134 = vld [vmem:[%s2 + $0x24] sm:$0xf]
    %v135 = vld [vmem:[%s2 + $0x28] sm:$0xf]
    %v136 = vld [vmem:[%s2 + $0x2c] sm:$0xf]
    %v137 = vld [vmem:[%s2 + $0x30] sm:$0xf]
    %v138 = vld [vmem:[%s2 + $0x34] sm:$0xf]
    %v139 = vld [vmem:[%s2 + $0x38] sm:$0xf]
    %v140 = vld [vmem:[%s2 + $0x3c] sm:$0xf]
    %v141 = vld [vmem:[%s3] sm:$0x1]
    %v143 = vlaneseq
    %v144 = vshrl.u32 %v143, 7
    %v145 = vsub.s32 0, %v144
    %v146 = vrot.slane %v141, %v145
    %v164 = vunpack.c.l.b16 %v125
    %v165 = vunpack.c.l.b16 %v126
    %v166 = vunpack.c.l.b16 %v127
    %v167 = vunpack.c.l.b16 %v128
    %v168 = vunpack.c.l.b16 %v129
    %v169 = vunpack.c.l.b16 %v130
    %v170 = vunpack.c.l.b16 %v131
    %v171 = vunpack.c.l.b16 %v132
    %v172 = vunpack.c.l.b16 %v133
    %v173 = vunpack.c.l.b16 %v134
    %v174 = vunpack.c.l.b16 %v135
    %v175 = vunpack.c.l.b16 %v136
    %v176 = vunpack.c.l.b16 %v137
    %v177 = vunpack.c.l.b16 %v138
    %v178 = vunpack.c.l.b16 %v139
    %v179 = vunpack.c.l.b16 %v140
    %v180 = vpack.c.b16 %v165, %v164
    %v181 = vpack.c.b16 %v167, %v166
    %v182 = vpack.c.b16 %v169, %v168
    %v183 = vpack.c.b16 %v171, %v170
    %v184 = vpack.c.b16 %v173, %v172
    %v185 = vpack.c.b16 %v175, %v174
    %v186 = vpack.c.b16 %v177, %v176
    %v187 = vpack.c.b16 %v179, %v178
    %196 = vmatprep.subr.bf16.mxu0 0
    %197 = vmatpush1.bf16.msra.mxu0 %v180
    %198 = vmatprep.subr.bf16.mxu0 0
    %199 = vmatpush1.bf16.msra.mxu0 %v181
    %200 = vmatprep.subr.bf16.mxu0 0
    %201 = vmatpush1.bf16.msra.mxu0 %v182
    %202 = vmatprep.subr.bf16.mxu0 0
    %203 = vmatpush1.bf16.msra.mxu0 %v183
    %204 = vmatprep.subr.bf16.mxu0 0
    %205 = vmatpush1.bf16.msra.mxu0 %v184
    %206 = vmatprep.subr.bf16.mxu0 0
    %207 = vmatpush1.bf16.msra.mxu0 %v185
    %208 = vmatprep.subr.bf16.mxu0 0
    %209 = vmatpush1.bf16.msra.mxu0 %v186
    %210 = vmatprep.subr.bf16.mxu0 0
    %211 = vmatpush1.bf16.msra.mxu0 %v187
    %212 = vmatprep.subr.bf16.mxu0 0
    %213 = vmatpush1.bf16.msra.mxu0 0
    %214 = vmatprep.subr.bf16.mxu0 0
    %215 = vmatpush1.bf16.msra.mxu0 0
    %216 = vmatprep.subr.bf16.mxu0 0
    %217 = vmatpush1.bf16.msra.mxu0 0
    %218 = vmatprep.subr.bf16.mxu0 0
    %219 = vmatpush1.bf16.msra.mxu0 0
    %220 = vmatprep.subr.bf16.mxu0 0
    %221 = vmatpush1.bf16.msra.mxu0 0
    %222 = vmatprep.subr.bf16.mxu0 0
    %223 = vmatpush1.bf16.msra.mxu0 0
    %224 = vmatprep.subr.bf16.mxu0 0
    %225 = vmatpush1.bf16.msra.mxu0 0
    %226 = vmatprep.subr.bf16.mxu0 0
    %227 = vmatpush1.bf16.msra.mxu0 0
    %228 = vmatprep.mubr.bf16.mxu0 0
    %229 = vmatmul.mubr.bf16.gmra.mrb[0].mxu0 %v124
    %v230 = vpop.f32.mrb[0].mxu0
    %v231 = vadd.f32 %v146, %v230
    %v232 = vpop.f32.mrb[0].mxu0
    %v233 = vpop.f32.mrb[0].mxu0
    %v234 = vpop.f32.mrb[0].mxu0
    %235 = vdwg.mxu0
    %v236 = vxor.u32 %v231, 2147483648
    %v237 = vmul.f32 %v236, 1.442695
    %v238 = vpow.pop %v237
    %v239 = vadd.f32 %v238, 1.0
    %v240 = vrcp.pop %v239
    %v241 = vmul.f32 1.0, %v240
    %v242 = vpack.c.bf16 %v241, %v241
    %v243 = vld [vmem:[%s4] sm:$0xf]
    %v244 = vld [vmem:[%s4 + $0x4] sm:$0xf]
    %v245 = vld [vmem:[%s4 + $0x8] sm:$0xf]
    %v246 = vld [vmem:[%s4 + $0xc] sm:$0xf]
    %v247 = vld [vmem:[%s4 + $0x10] sm:$0xf]
    %v248 = vld [vmem:[%s4 + $0x14] sm:$0xf]
    %v249 = vld [vmem:[%s4 + $0x18] sm:$0xf]
    %v250 = vld [vmem:[%s4 + $0x1c] sm:$0xf]
    %v251 = vld [vmem:[%s4 + $0x20] sm:$0xf]
    %v252 = vld [vmem:[%s4 + $0x24] sm:$0xf]
    %v253 = vld [vmem:[%s4 + $0x28] sm:$0xf]
    %v254 = vld [vmem:[%s4 + $0x2c] sm:$0xf]
    %v255 = vld [vmem:[%s4 + $0x30] sm:$0xf]
    %v256 = vld [vmem:[%s4 + $0x34] sm:$0xf]
    %v257 = vld [vmem:[%s4 + $0x38] sm:$0xf]
    %v258 = vld [vmem:[%s4 + $0x3c] sm:$0xf]
    %v259 = vld [vmem:[%s5] sm:$0x1]
    %v261 = vlaneseq
    %v262 = vshrl.u32 %v261, 7
    %v263 = vsub.s32 0, %v262
    %v264 = vrot.slane %v259, %v263
    %v282 = vunpack.c.l.b16 %v243
    %v283 = vunpack.c.l.b16 %v244
    %v284 = vunpack.c.l.b16 %v245
    %v285 = vunpack.c.l.b16 %v246
    %v286 = vunpack.c.l.b16 %v247
    %v287 = vunpack.c.l.b16 %v248
    %v288 = vunpack.c.l.b16 %v249
    %v289 = vunpack.c.l.b16 %v250
    %v290 = vunpack.c.l.b16 %v251
    %v291 = vunpack.c.l.b16 %v252
    %v292 = vunpack.c.l.b16 %v253
    %v293 = vunpack.c.l.b16 %v254
    %v294 = vunpack.c.l.b16 %v255
    %v295 = vunpack.c.l.b16 %v256
    %v296 = vunpack.c.l.b16 %v257
    %v297 = vunpack.c.l.b16 %v258
    %v298 = vpack.c.b16 %v283, %v282
    %v299 = vpack.c.b16 %v285, %v284
    %v300 = vpack.c.b16 %v287, %v286
    %v301 = vpack.c.b16 %v289, %v288
    %v302 = vpack.c.b16 %v291, %v290
    %v303 = vpack.c.b16 %v293, %v292
    %v304 = vpack.c.b16 %v295, %v294
    %v305 = vpack.c.b16 %v297, %v296
    %314 = vmatprep.subr.bf16.mxu0 0
    %315 = vmatpush1.bf16.msra.mxu0 %v298
    %316 = vmatprep.subr.bf16.mxu0 0
    %317 = vmatpush1.bf16.msra.mxu0 %v299
    %318 = vmatprep.subr.bf16.mxu0 0
    %319 = vmatpush1.bf16.msra.mxu0 %v300
    %320 = vmatprep.subr.bf16.mxu0 0
    %321 = vmatpush1.bf16.msra.mxu0 %v301
    %322 = vmatprep.subr.bf16.mxu0 0
    %323 = vmatpush1.bf16.msra.mxu0 %v302
    %324 = vmatprep.subr.bf16.mxu0 0
    %325 = vmatpush1.bf16.msra.mxu0 %v303
    %326 = vmatprep.subr.bf16.mxu0 0
    %327 = vmatpush1.bf16.msra.mxu0 %v304
    %328 = vmatprep.subr.bf16.mxu0 0
    %329 = vmatpush1.bf16.msra.mxu0 %v305
    %330 = vmatprep.subr.bf16.mxu0 0
    %331 = vmatpush1.bf16.msra.mxu0 0
    %332 = vmatprep.subr.bf16.mxu0 0
    %333 = vmatpush1.bf16.msra.mxu0 0
    %334 = vmatprep.subr.bf16.mxu0 0
    %335 = vmatpush1.bf16.msra.mxu0 0
    %336 = vmatprep.subr.bf16.mxu0 0
    %337 = vmatpush1.bf16.msra.mxu0 0
    %338 = vmatprep.subr.bf16.mxu0 0
    %339 = vmatpush1.bf16.msra.mxu0 0
    %340 = vmatprep.subr.bf16.mxu0 0
    %341 = vmatpush1.bf16.msra.mxu0 0
    %342 = vmatprep.subr.bf16.mxu0 0
    %343 = vmatpush1.bf16.msra.mxu0 0
    %344 = vmatprep.subr.bf16.mxu0 0
    %345 = vmatpush1.bf16.msra.mxu0 0
    %346 = vmatprep.mubr.bf16.mxu0 0
    %347 = vmatmul.mubr.bf16.gmra.mrb[0].mxu0 %v242
    %v348 = vpop.f32.mrb[0].mxu0
    %v349 = vadd.f32 %v264, %v348
    %v350 = vpop.f32.mrb[0].mxu0
    %v351 = vpop.f32.mrb[0].mxu0
    %v352 = vpop.f32.mrb[0].mxu0
    %353 = vdwg.mxu0
    %v354 = vxor.u32 %v349, 2147483648
    %v355 = vmul.f32 %v354, 1.442695
    %v356 = vpow.pop %v355
    %v357 = vadd.f32 %v356, 1.0
    %v358 = vrcp.pop %v357
    %v359 = vmul.f32 1.0, %v358
    %vm360 = vcmask 31744
    %361 = vst.msk [vmem:[%s6] sm:$0xff] %vm360, %v359
    // Predicated region
    $region30: #{tpu_custom_call.1} parent=1 // pred_check
      _
    $region31: #{tpu_custom_call.1} parent=1 // pred_check_branch
      %363 = sbr.rel (0) target = $region33
    $region32: #{tpu_custom_call.1} parent=1 // pred_region
      _
    $region33: #{tpu_custom_call.1} parent=1 // pred_fallthru
      _
    // Predicated region
    $region34: #{tpu_custom_call.1} parent=1 // pred_check
      _
    $region35: #{tpu_custom_call.1} parent=1 // pred_check_branch
      %365 = sbr.rel (0) target = $region37
    $region36: #{tpu_custom_call.1} parent=1 // pred_region
      _
    $region37: #{tpu_custom_call.1} parent=1 // pred_fallthru
      _
    %366 = vsyncpa [#allocation3], 1

// kernel: tpu_custom_call.1
$region0: #{tpu_custom_call.1}
  #allocation0 [shape = 'u32[]', space=smem, size = 0x4, offset = 0x4, fixed_abs, tag = 'smem constant byte address 0x4 - core index']
  #allocation1 [shape = 'u32[144,128]{1,0:T(1,128)}', space=vmem, size = 0x12000, scoped, tag = 'internal scratch']
  %s0 = inlined_call_operand.vmem [shape: f32[8,30], index: 0, kind: input, shape index: {}]
  %s1 = inlined_call_operand.hbm [shape: bf16[30,256], index: 1, kind: input, shape index: {}]
  %s2 = inlined_call_operand.vmem [shape: bf16[128,128], index: 2, kind: input, shape index: {}]
  %s3 = inlined_call_operand.vmem [shape: f32[1,128], index: 3, kind: input, shape index: {}]
  %s4 = inlined_call_operand.vmem [shape: bf16[128,4], index: 4, kind: input, shape index: {}]
  %s5 = inlined_call_operand.vmem [shape: f32[1,4], index: 5, kind: input, shape index: {}]
  %s6 = inlined_call_operand.vmem [shape: f32[8,4], index: 6, kind: output, shape index: {}]
  %s7 = sld [smem:[#allocation0]]
  $region38: #{tpu_custom_call.1} parent=0
    _
  %s9 = ssub.s32 1, %s7
  %s10 = scalar_select 0, %s9, %s7
  $region1: #{tpu_custom_call.1} parent=0
    #allocation2 [shape = 'u8[16384]{0}', space=vmem, size = 0x4000, scoped, tag = 'input window, operand 1, single buffered']
    #allocation3 [shape = 's32[1]{0}', space=sflag, size = 0x4, scoped, tag = 'scoped memory for tpu_custom_call.1']
    %11 = vsyncpa [#allocation3], 0
    // Predicated region
    $region2: #{tpu_custom_call.1} parent=1 // pred_check
      _
    $region3: #{tpu_custom_call.1} parent=1 // pred_check_branch
      %13 = sbr.rel (0) target = $region5
    $region4: #{tpu_custom_call.1} parent=1 // pred_region
      _
    $region5: #{tpu_custom_call.1} parent=1 // pred_fallthru
      _
    // Predicated region
    $region6: #{tpu_custom_call.1} parent=1 // pred_check
      _
    $region7: #{tpu_custom_call.1} parent=1 // pred_check_branch
      %15 = sbr.rel (0) target = $region9
    $region8: #{tpu_custom_call.1} parent=1 // pred_region
      %s17 = ssub.s32 512, 512
      %18 = vsyncadd [#allocation3], %s17
      %s19 = sshll.u32 [#allocation2], 4
      %s20 = int_to_ptr.vmem [resolvable:$true] %s19
      %25 = dma.hbm_to_vmem [thread:$0]  %s1, 512, %s20, [#allocation3], 128, 128, 8
    $region9: #{tpu_custom_call.1} parent=1 // pred_fallthru
      _
    // Predicated region
    $region10: #{tpu_custom_call.1} parent=1 // pred_check
      _
    $region11: #{tpu_custom_call.1} parent=1 // pred_check_branch
      %27 = sbr.rel (0) target = $region13
    $region12: #{tpu_custom_call.1} parent=1 // pred_region
      _
    $region13: #{tpu_custom_call.1} parent=1 // pred_fallthru
      _
    // Predicated region
    $region14: #{tpu_custom_call.1} parent=1 // pred_check
      _
    $region15: #{tpu_custom_call.1} parent=1 // pred_check_branch
      %29 = sbr.rel (0) target = $region17
    $region16: #{tpu_custom_call.1} parent=1 // pred_region
      _
    $region17: #{tpu_custom_call.1} parent=1 // pred_fallthru
      _
    // Predicated region
    $region18: #{tpu_custom_call.1} parent=1 // pred_check
      _
    $region19: #{tpu_custom_call.1} parent=1 // pred_check_branch
      %31 = sbr.rel (0) target = $region21
    $region20: #{tpu_custom_call.1} parent=1 // pred_region
      _
    $region21: #{tpu_custom_call.1} parent=1 // pred_fallthru
      _
    // Predicated region
    $region22: #{tpu_custom_call.1} parent=1 // pred_check
      _
    $region23: #{tpu_custom_call.1} parent=1 // pred_check_branch
      %33 = sbr.rel (0) target = $region25
    $region24: #{tpu_custom_call.1} parent=1 // pred_region
      _
    $region25: #{tpu_custom_call.1} parent=1 // pred_fallthru
      _
    // Predicated region
    $region26: #{tpu_custom_call.1} parent=1 // pred_check
      _
    $region27: #{tpu_custom_call.1} parent=1 // pred_check_branch
      %35 = sbr.rel (0) target = $region29
    $region28: #{tpu_custom_call.1} parent=1 // pred_region
      %36 = dma.done [#allocation3], 512
    $region29: #{tpu_custom_call.1} parent=1 // pred_fallthru
      _
    %v38 = vld [vmem:[%s0] sm:$0xff]
    %v39 = vpack.c.bf16 %v38, %v38
    %v40 = vld [vmem:[#allocation2] sm:$0xff]
    %v41 = vld [vmem:[#allocation2 + $0x8] sm:$0xff]
    %v42 = vld [vmem:[#allocation2 + $0x10] sm:$0xff]
    %v43 = vld [vmem:[#allocation2 + $0x18] sm:$0x77]
    %v48 = vunpack.c.l.b16 %v40
    %v49 = vunpack.c.h.b16 %v40
    %v50 = vunpack.c.l.b16 %v41
    %v51 = vunpack.c.h.b16 %v41
    %v52 = vunpack.c.l.b16 %v42
    %v53 = vunpack.c.h.b16 %v42
    %v54 = vunpack.c.l.b16 %v43
    %v55 = vunpack.c.h.b16 %v43
    %v56 = vpack.c.b16 %v50, %v48
    %v57 = vpack.c.b16 %v51, %v49
    %v58 = vpack.c.b16 %v54, %v52
    %v59 = vpack.c.b16 %v55, %v53
    %vm62 = vcmask 244736
    %v64 = vsel %vm62, %v39, 0
    %vm66 = vcmask 1046528
    %v68 = vsel %vm66, %v58, 0
    %v71 = vsel %vm66, %v59, 0
    %73 = vmatprep.subr.bf16.mxu0 %v57
    %74 = vmatpush1.bf16.msra.mxu0 %v56
    %75 = vmatprep.subr.bf16.mxu0 %v71
    %76 = vmatpush1.bf16.msra.mxu0 %v68
    %77 = vmatprep.subr.bf16.mxu0 0
    %78 = vmatpush1.bf16.msra.mxu0 0
    %79 = vmatprep.subr.bf16.mxu0 0
    %80 = vmatpush1.bf16.msra.mxu0 0
    %81 = vmatprep.subr.bf16.mxu0 0
    %82 = vmatpush1.bf16.msra.mxu0 0
    %83 = vmatprep.subr.bf16.mxu0 0
    %84 = vmatpush1.bf16.msra.mxu0 0
    %85 = vmatprep.subr.bf16.mxu0 0
    %86 = vmatpush1.bf16.msra.mxu0 0
    %87 = vmatprep.subr.bf16.mxu0 0
    %88 = vmatpush1.bf16.msra.mxu0 0
    %89 = vmatprep.subr.bf16.mxu0 0
    %90 = vmatpush1.bf16.msra.mxu0 0
    %91 = vmatprep.subr.bf16.mxu0 0
    %92 = vmatpush1.bf16.msra.mxu0 0
    %93 = vmatprep.subr.bf16.mxu0 0
    %94 = vmatpush1.bf16.msra.mxu0 0
    %95 = vmatprep.subr.bf16.mxu0 0
    %96 = vmatpush1.bf16.msra.mxu0 0
    %97 = vmatprep.subr.bf16.mxu0 0
    %98 = vmatpush1.bf16.msra.mxu0 0
    %99 = vmatprep.subr.bf16.mxu0 0
    %100 = vmatpush1.bf16.msra.mxu0 0
    %101 = vmatprep.subr.bf16.mxu0 0
    %102 = vmatpush1.bf16.msra.mxu0 0
    %103 = vmatprep.subr.bf16.mxu0 0
    %104 = vmatpush1.bf16.msra.mxu0 0
    %105 = vmatprep.mubr.bf16.mxu0 0
    %106 = vmatmul.mubr.bf16.gmra.mrb[0].mxu0 %v64
    %v107 = vpop.f32.mrb[0].mxu0
    %v108 = vadd.f32 0.0, %v107
    %v109 = vpop.f32.mrb[0].mxu0
    %v110 = vadd.f32 0.0, %v109
    %v111 = vpop.f32.mrb[0].mxu0
    %v112 = vpop.f32.mrb[0].mxu0
    %113 = vdwg.mxu0
    %v114 = vmul.f32 %v108, %v108
    %v115 = vmul.f32 %v110, %v110
    %v116 = vadd.f32 %v114, %v115
    %v117 = vrsqrt.pop %v116
    %v118 = vmul.f32 %v116, %v117
    %vm119 = vcmp.eq.f32.partialorder %v116, inf
    %v120 = vsel %vm119, %v116, %v118
    %vm121 = vcmp.eq.f32.partialorder %v116, 0.0
    %v122 = vand.u32 %v116, 2147483648
    %v123 = vsel %vm121, %v122, %v120
    %v124 = vpack.c.bf16 %v123, %v123
    %v125 = vld [vmem:[%s2] sm:$0xf]
    %v126 = vld [vmem:[%s2 + $0x4] sm:$0xf]
    %v127 = vld [vmem:[%s2 + $0x8] sm:$0xf]
    %v128 = vld [vmem:[%s2 + $0xc] sm:$0xf]
    %v129 = vld [vmem:[%s2 + $0x10] sm:$0xf]
    %v130 = vld [vmem:[%s2 + $0x14] sm:$0xf]
    %v131 = vld [vmem:[%s2 + $0x18] sm:$0xf]
    %v132 = vld [vmem:[%s2 + $0x1c] sm:$0xf]
    %v133 = vld [vmem:[%s2 + $0x20] sm:$0xf]
    %v134 = vld [vmem:[%s2 + $0x24] sm:$0xf]
    %v135 = vld [vmem:[%s2 + $0x28] sm:$0xf]
    %v136 = vld [vmem:[%s2 + $0x2c] sm:$0xf]
    %v137 = vld [vmem:[%s2 + $0x30] sm:$0xf]
    %v138 = vld [vmem:[%s2 + $0x34] sm:$0xf]
    %v139 = vld [vmem:[%s2 + $0x38] sm:$0xf]
    %v140 = vld [vmem:[%s2 + $0x3c] sm:$0xf]
    %v141 = vld [vmem:[%s3] sm:$0x1]
    %v143 = vlaneseq
    %v144 = vshrl.u32 %v143, 7
    %v145 = vsub.s32 0, %v144
    %v146 = vrot.slane %v141, %v145
    %v164 = vunpack.c.l.b16 %v125
    %v165 = vunpack.c.l.b16 %v126
    %v166 = vunpack.c.l.b16 %v127
    %v167 = vunpack.c.l.b16 %v128
    %v168 = vunpack.c.l.b16 %v129
    %v169 = vunpack.c.l.b16 %v130
    %v170 = vunpack.c.l.b16 %v131
    %v171 = vunpack.c.l.b16 %v132
    %v172 = vunpack.c.l.b16 %v133
    %v173 = vunpack.c.l.b16 %v134
    %v174 = vunpack.c.l.b16 %v135
    %v175 = vunpack.c.l.b16 %v136
    %v176 = vunpack.c.l.b16 %v137
    %v177 = vunpack.c.l.b16 %v138
    %v178 = vunpack.c.l.b16 %v139
    %v179 = vunpack.c.l.b16 %v140
    %v180 = vpack.c.b16 %v165, %v164
    %v181 = vpack.c.b16 %v167, %v166
    %v182 = vpack.c.b16 %v169, %v168
    %v183 = vpack.c.b16 %v171, %v170
    %v184 = vpack.c.b16 %v173, %v172
    %v185 = vpack.c.b16 %v175, %v174
    %v186 = vpack.c.b16 %v177, %v176
    %v187 = vpack.c.b16 %v179, %v178
    %196 = vmatprep.subr.bf16.mxu0 0
    %197 = vmatpush1.bf16.msra.mxu0 %v180
    %198 = vmatprep.subr.bf16.mxu0 0
    %199 = vmatpush1.bf16.msra.mxu0 %v181
    %200 = vmatprep.subr.bf16.mxu0 0
    %201 = vmatpush1.bf16.msra.mxu0 %v182
    %202 = vmatprep.subr.bf16.mxu0 0
    %203 = vmatpush1.bf16.msra.mxu0 %v183
    %204 = vmatprep.subr.bf16.mxu0 0
    %205 = vmatpush1.bf16.msra.mxu0 %v184
    %206 = vmatprep.subr.bf16.mxu0 0
    %207 = vmatpush1.bf16.msra.mxu0 %v185
    %208 = vmatprep.subr.bf16.mxu0 0
    %209 = vmatpush1.bf16.msra.mxu0 %v186
    %210 = vmatprep.subr.bf16.mxu0 0
    %211 = vmatpush1.bf16.msra.mxu0 %v187
    %212 = vmatprep.subr.bf16.mxu0 0
    %213 = vmatpush1.bf16.msra.mxu0 0
    %214 = vmatprep.subr.bf16.mxu0 0
    %215 = vmatpush1.bf16.msra.mxu0 0
    %216 = vmatprep.subr.bf16.mxu0 0
    %217 = vmatpush1.bf16.msra.mxu0 0
    %218 = vmatprep.subr.bf16.mxu0 0
    %219 = vmatpush1.bf16.msra.mxu0 0
    %220 = vmatprep.subr.bf16.mxu0 0
    %221 = vmatpush1.bf16.msra.mxu0 0
    %222 = vmatprep.subr.bf16.mxu0 0
    %223 = vmatpush1.bf16.msra.mxu0 0
    %224 = vmatprep.subr.bf16.mxu0 0
    %225 = vmatpush1.bf16.msra.mxu0 0
    %226 = vmatprep.subr.bf16.mxu0 0
    %227 = vmatpush1.bf16.msra.mxu0 0
    %228 = vmatprep.mubr.bf16.mxu0 0
    %229 = vmatmul.mubr.bf16.gmra.mrb[0].mxu0 %v124
    %v230 = vpop.f32.mrb[0].mxu0
    %v231 = vadd.f32 %v146, %v230
    %v232 = vpop.f32.mrb[0].mxu0
    %v233 = vpop.f32.mrb[0].mxu0
    %v234 = vpop.f32.mrb[0].mxu0
    %235 = vdwg.mxu0
    %v236 = vxor.u32 %v231, 2147483648
    %v237 = vmul.f32 %v236, 1.442695
    %v238 = vpow.pop %v237
    %v239 = vadd.f32 %v238, 1.0
    %v240 = vrcp.pop %v239
    %v241 = vmul.f32 1.0, %v240
    %v242 = vpack.c.bf16 %v241, %v241
    %v243 = vld [vmem:[%s4] sm:$0xf]
    %v244 = vld [vmem:[%s4 + $0x4] sm:$0xf]
    %v245 = vld [vmem:[%s4 + $0x8] sm:$0xf]
    %v246 = vld [vmem:[%s4 + $0xc] sm:$0xf]
    %v247 = vld [vmem:[%s4 + $0x10] sm:$0xf]
    %v248 = vld [vmem:[%s4 + $0x14] sm:$0xf]
    %v249 = vld [vmem:[%s4 + $0x18] sm:$0xf]
    %v250 = vld [vmem:[%s4 + $0x1c] sm:$0xf]
    %v251 = vld [vmem:[%s4 + $0x20] sm:$0xf]
    %v252 = vld [vmem:[%s4 + $0x24] sm:$0xf]
    %v253 = vld [vmem:[%s4 + $0x28] sm:$0xf]
    %v254 = vld [vmem:[%s4 + $0x2c] sm:$0xf]
    %v255 = vld [vmem:[%s4 + $0x30] sm:$0xf]
    %v256 = vld [vmem:[%s4 + $0x34] sm:$0xf]
    %v257 = vld [vmem:[%s4 + $0x38] sm:$0xf]
    %v258 = vld [vmem:[%s4 + $0x3c] sm:$0xf]
    %v259 = vld [vmem:[%s5] sm:$0x1]
    %v261 = vlaneseq
    %v262 = vshrl.u32 %v261, 7
    %v263 = vsub.s32 0, %v262
    %v264 = vrot.slane %v259, %v263
    %v282 = vunpack.c.l.b16 %v243
    %v283 = vunpack.c.l.b16 %v244
    %v284 = vunpack.c.l.b16 %v245
    %v285 = vunpack.c.l.b16 %v246
    %v286 = vunpack.c.l.b16 %v247
    %v287 = vunpack.c.l.b16 %v248
    %v288 = vunpack.c.l.b16 %v249
    %v289 = vunpack.c.l.b16 %v250
    %v290 = vunpack.c.l.b16 %v251
    %v291 = vunpack.c.l.b16 %v252
    %v292 = vunpack.c.l.b16 %v253
    %v293 = vunpack.c.l.b16 %v254
    %v294 = vunpack.c.l.b16 %v255
    %v295 = vunpack.c.l.b16 %v256
    %v296 = vunpack.c.l.b16 %v257
    %v297 = vunpack.c.l.b16 %v258
    %v298 = vpack.c.b16 %v283, %v282
    %v299 = vpack.c.b16 %v285, %v284
    %v300 = vpack.c.b16 %v287, %v286
    %v301 = vpack.c.b16 %v289, %v288
    %v302 = vpack.c.b16 %v291, %v290
    %v303 = vpack.c.b16 %v293, %v292
    %v304 = vpack.c.b16 %v295, %v294
    %v305 = vpack.c.b16 %v297, %v296
    %314 = vmatprep.subr.bf16.mxu0 0
    %315 = vmatpush1.bf16.msra.mxu0 %v298
    %316 = vmatprep.subr.bf16.mxu0 0
    %317 = vmatpush1.bf16.msra.mxu0 %v299
    %318 = vmatprep.subr.bf16.mxu0 0
    %319 = vmatpush1.bf16.msra.mxu0 %v300
    %320 = vmatprep.subr.bf16.mxu0 0
    %321 = vmatpush1.bf16.msra.mxu0 %v301
    %322 = vmatprep.subr.bf16.mxu0 0
    %323 = vmatpush1.bf16.msra.mxu0 %v302
    %324 = vmatprep.subr.bf16.mxu0 0
    %325 = vmatpush1.bf16.msra.mxu0 %v303
    %326 = vmatprep.subr.bf16.mxu0 0
    %327 = vmatpush1.bf16.msra.mxu0 %v304
    %328 = vmatprep.subr.bf16.mxu0 0
    %329 = vmatpush1.bf16.msra.mxu0 %v305
    %330 = vmatprep.subr.bf16.mxu0 0
    %331 = vmatpush1.bf16.msra.mxu0 0
    %332 = vmatprep.subr.bf16.mxu0 0
    %333 = vmatpush1.bf16.msra.mxu0 0
    %334 = vmatprep.subr.bf16.mxu0 0
    %335 = vmatpush1.bf16.msra.mxu0 0
    %336 = vmatprep.subr.bf16.mxu0 0
    %337 = vmatpush1.bf16.msra.mxu0 0
    %338 = vmatprep.subr.bf16.mxu0 0
    %339 = vmatpush1.bf16.msra.mxu0 0
    %340 = vmatprep.subr.bf16.mxu0 0
    %341 = vmatpush1.bf16.msra.mxu0 0
    %342 = vmatprep.subr.bf16.mxu0 0
    %343 = vmatpush1.bf16.msra.mxu0 0
    %344 = vmatprep.subr.bf16.mxu0 0
    %345 = vmatpush1.bf16.msra.mxu0 0
    %346 = vmatprep.mubr.bf16.mxu0 0
    %347 = vmatmul.mubr.bf16.gmra.mrb[0].mxu0 %v242
    %v348 = vpop.f32.mrb[0].mxu0
    %v349 = vadd.f32 %v264, %v348
    %v350 = vpop.f32.mrb[0].mxu0
    %v351 = vpop.f32.mrb[0].mxu0
    %v352 = vpop.f32.mrb[0].mxu0
    %353 = vdwg.mxu0
    %v354 = vxor.u32 %v349, 2147483648
    %v355 = vmul.f32 %v354, 1.442695
    %v356 = vpow.pop %v355
    %v357 = vadd.f32 %v356, 1.0
    %v358 = vrcp.pop %v357
    %v359 = vmul.f32 1.0, %v358
    %vm360 = vcmask 31744
    %361 = vst.msk [vmem:[%s6] sm:$0xff] %vm360, %v359
    // Predicated region
    $region30: #{tpu_custom_call.1} parent=1 // pred_check
      _
    $region31: #{tpu_custom_call.1} parent=1 // pred_check_branch
      %363 = sbr.rel (0) target = $region33
    $region32: #{tpu_custom_call.1} parent=1 // pred_region
      _
    $region33: #{tpu_custom_call.1} parent=1 // pred_fallthru
      _
    // Predicated region
    $region34: #{tpu_custom_call.1} parent=1 // pred_check
      _
    $region35: #{tpu_custom_call.1} parent=1 // pred_check_branch
      %365 = sbr.rel (0) target = $region37
    $region36: #{tpu_custom_call.1} parent=1 // pred_region
      _
    $region37: #{tpu_custom_call.1} parent=1 // pred_fallthru
      _
    %366 = vsyncpa [#allocation3], 1

</llo_original>
